<compile_context>
chip_gen: v7x
topology: tpu7x:2x2x1
jax: 0.10.0
libtpu: 0.0.40
codegen_flags: <defaults>
</compile_context>

<pallas_src>
import functools

import jax
import jax.numpy as jnp
from jax.experimental import pallas as pl
from jax.experimental.pallas import tpu as pltpu

INPUT_DIM = 784
HIDDEN_DIM = 128
LATENT_DIM = 2
SUBLANE = 8


def _round_up(n, m):
    return ((n + m - 1) // m) * m


def _vae_kernel(x_ref, w1_ref, b1_ref, w2m_ref, b2m_ref, w2v_ref, b2v_ref,
                w3_ref, b3_ref, w4_ref, b4_ref, eps_ref,
                recon_ref, stats_ref):
    x = x_ref[...]                                                 # [TB, 784]

    # ---- encoder: Linear(784 -> 128) + ReLU ----
    h = jnp.dot(x.astype(w1_ref.dtype), w1_ref[...],
                preferred_element_type=jnp.float32) + b1_ref[...]
    h = jnp.maximum(h, 0.0)                                        # [TB, 128]

    # ---- encoder head: two small dots (avoids [128,4] matmul + lane slicing) ----
    mu = jnp.dot(h, w2m_ref[...], preferred_element_type=jnp.float32) + b2m_ref[...]
    logvar = jnp.dot(h, w2v_ref[...], preferred_element_type=jnp.float32) + b2v_ref[...]

    # ---- reparameterize: z = mu + eps * exp(0.5 * logvar) ----
    std = jnp.exp(0.5 * logvar)
    z = mu + eps_ref[...].astype(jnp.float32) * std                # [TB, 2]

    # ---- decoder layer 1: K=2 contraction as VPU broadcast-FMAs (MXU pass not needed) ----
    h2 = z[:, 0:1] * w3_ref[0:1, :] + z[:, 1:2] * w3_ref[1:2, :] + b3_ref[...]
    h2 = jnp.maximum(h2, 0.0)                                      # [TB, 128]

    # ---- decoder layer 2: Linear(128 -> 784) + Sigmoid ----
    out = jnp.dot(h2.astype(w4_ref.dtype), w4_ref[...],
                  preferred_element_type=jnp.float32) + b4_ref[...]
    # sigmoid(x) == 0.5 * (tanh(0.5 * x) + 1): one EUP transcendental per element
    # (vs. exp + reciprocal), keeping the EUP slot off the critical path.
    recon_ref[...] = (0.5 * (jnp.tanh(0.5 * out) + 1.0)).astype(recon_ref.dtype)

    # ---- pack mu / logvar into one [TB, 4] stats tile (split in the wrapper) ----
    stats_ref[...] = jnp.concatenate([mu, logvar], axis=-1).astype(stats_ref.dtype)


def prepare_params(params, use_bf16=False):
    """Split PyTorch-layout params into kernel-ready tensors (no lane padding needed)."""
    w1, b1, w2, b2, w3, b3, w4, b4 = params
    mm_dtype = jnp.bfloat16 if use_bf16 else jnp.float32
    w2_mu, w2_lv = w2[:, :LATENT_DIM], w2[:, LATENT_DIM:]
    b2_mu, b2_lv = b2[:, :LATENT_DIM], b2[:, LATENT_DIM:]
    return (w1.astype(mm_dtype), b1.astype(jnp.float32),
            w2_mu.astype(jnp.float32), b2_mu.astype(jnp.float32),
            w2_lv.astype(jnp.float32), b2_lv.astype(jnp.float32),
            w3.astype(jnp.float32), b3.astype(jnp.float32),
            w4.astype(mm_dtype), b4.astype(jnp.float32))


@functools.partial(jax.jit, static_argnames=("block_batch", "use_bf16"))
def vae_forward(x, params, eps, *, block_batch=512, use_bf16=False):
    """x: [B, 784] f32; eps: [B, latent] f32. Returns (reconstructed, mu, logvar)."""
    B = x.shape[0]
    (w1, b1, w2m, b2m, w2v, b2v, w3, b3, w4, b4) = prepare_params(params, use_bf16)

    # Batch tiling: pad only the batch dim to a tile multiple (tile is a sublane multiple).
    tb = min(block_batch, _round_up(max(B, 1), SUBLANE))
    tb = _round_up(tb, SUBLANE)
    Bp = _round_up(max(B, 1), tb)
    grid = (Bp // tb,)

    xp = x if Bp == B else jnp.pad(x, ((0, Bp - B), (0, 0)))
    epsp = eps if Bp == B else jnp.pad(eps, ((0, Bp - B), (0, 0)))

    def tile_spec(width):
        return pl.BlockSpec((tb, width), lambda i: (i, 0))

    def resident_spec(arr):
        # Constant block index -> stays resident in VMEM across the batch grid.
        return pl.BlockSpec(arr.shape, lambda i: (0, 0))

    in_specs = [
        tile_spec(INPUT_DIM),                    # x
        resident_spec(w1), resident_spec(b1),
        resident_spec(w2m), resident_spec(b2m),
        resident_spec(w2v), resident_spec(b2v),
        resident_spec(w3), resident_spec(b3),
        resident_spec(w4), resident_spec(b4),
        tile_spec(LATENT_DIM),                   # eps
    ]
    out_specs = (tile_spec(INPUT_DIM), tile_spec(2 * LATENT_DIM))
    out_shape = (
        jax.ShapeDtypeStruct((Bp, INPUT_DIM), jnp.float32),       # recon (no lane padding)
        jax.ShapeDtypeStruct((Bp, 2 * LATENT_DIM), jnp.float32),  # packed [mu | logvar]
    )

    def nbytes(a):
        return a.size * a.dtype.itemsize

    weight_bytes = sum(nbytes(a) for a in (w1, b1, w2m, b2m, w2v, b2v, w3, b3, w4, b4))
    cost = pl.CostEstimate(
        flops=2 * Bp * (INPUT_DIM * HIDDEN_DIM + 2 * HIDDEN_DIM * LATENT_DIM
                        + LATENT_DIM * HIDDEN_DIM + HIDDEN_DIM * INPUT_DIM),
        transcendentals=Bp * (LATENT_DIM + INPUT_DIM),
        bytes_accessed=nbytes(xp) + nbytes(epsp) + weight_bytes
                       + Bp * INPUT_DIM * 4 + Bp * 2 * LATENT_DIM * 4,
    )

    recon_p, stats = pl.pallas_call(
        _vae_kernel,
        out_shape=out_shape,
        grid=grid,
        in_specs=in_specs,
        out_specs=out_specs,
        compiler_params=pltpu.CompilerParams(
            dimension_semantics=("parallel",)),   # shard batch tiles across TCs (v7x)
        cost_estimate=cost,
    )(xp, w1, b1, w2m, b2m, w2v, b2v, w3, b3, w4, b4, epsp)

    recon = recon_p if Bp == B else recon_p[:B]
    mu = stats[:B, :LATENT_DIM]
    logvar = stats[:B, LATENT_DIM:]
    return recon, mu, logvar


def init_params(key):
    """Deterministic PyTorch-style (Kaiming-uniform-ish) init. Biases stored as [1, out]."""
    def linear(k, fan_in, fan_out):
        kw, kb = jax.random.split(k)
        bound = 1.0 / jnp.sqrt(fan_in)
        w = jax.random.uniform(kw, (fan_in, fan_out), jnp.float32, -bound, bound)
        b = jax.random.uniform(kb, (1, fan_out), jnp.float32, -bound, bound)
        return w, b

    k1, k2, k3, k4 = jax.random.split(key, 4)
    w1, b1 = linear(k1, INPUT_DIM, HIDDEN_DIM)          # encoder.0
    w2, b2 = linear(k2, HIDDEN_DIM, LATENT_DIM * 2)     # encoder.2
    w3, b3 = linear(k3, LATENT_DIM, HIDDEN_DIM)         # decoder.0
    w4, b4 = linear(k4, HIDDEN_DIM, INPUT_DIM)          # decoder.2
    return (w1, b1, w2, b2, w3, b3, w4, b4)


def vae_reference(x, params, eps):
    """Plain-JAX reference for sanity checking."""
    w1, b1, w2, b2, w3, b3, w4, b4 = params
    h = jnp.maximum(x @ w1 + b1, 0.0)
    z2 = h @ w2 + b2
    mu, logvar = z2[:, :LATENT_DIM], z2[:, LATENT_DIM:]
    z = mu + eps * jnp.exp(0.5 * logvar)
    h2 = jnp.maximum(z @ w3 + b3, 0.0)
    recon = jax.nn.sigmoid(h2 @ w4 + b4)
    return recon, mu, logvar


if __name__ == "__main__":
    key = jax.random.PRNGKey(0)
    kx, keps, kp = jax.random.split(key, 3)
    params = init_params(kp)

    # ---- small demo (matches the PyTorch spec's flat [N, 784] input) ----
    B = 2
    x = jax.random.normal(kx, (B, INPUT_DIM), jnp.float32)
    # TODO(synk): torch uses randn_like inside forward; randomness is supplied here as an
    # explicit eps input so the kernel stays deterministic.
    eps = jax.random.normal(keps, (B, LATENT_DIM), jnp.float32)

    recon, mu, logvar = jax.block_until_ready(vae_forward(x, params, eps))
    r_ref, mu_ref, lv_ref = vae_reference(x, params, eps)

    assert recon.shape == (B, INPUT_DIM)
    assert mu.shape == (B, LATENT_DIM) and logvar.shape == (B, LATENT_DIM)
    assert jnp.allclose(recon, r_ref, atol=1e-4), "reconstruction mismatch"
    assert jnp.allclose(mu, mu_ref, atol=2e-5), "mu mismatch"
    assert jnp.allclose(logvar, lv_ref, atol=2e-5), "logvar mismatch"

    # ---- exercise the multi-tile grid path (batch padding + resident weights) ----
    B2 = 300
    kx2, keps2 = jax.random.split(kx)
    x2 = jax.random.normal(kx2, (B2, INPUT_DIM), jnp.float32)
    eps2 = jax.random.normal(keps2, (B2, LATENT_DIM), jnp.float32)
    r2, mu2, lv2 = jax.block_until_ready(
        vae_forward(x2, params, eps2, block_batch=128))
    r2_ref, mu2_ref, lv2_ref = vae_reference(x2, params, eps2)
    assert jnp.allclose(r2, r2_ref, atol=1e-4), "tiled reconstruction mismatch"
    assert jnp.allclose(mu2, mu2_ref, atol=2e-5), "tiled mu mismatch"
    assert jnp.allclose(lv2, lv2_ref, atol=2e-5), "tiled logvar mismatch"

    print("KERNEL_OK")
</pallas_src>

<mosaic_0001>
module attributes {stable_mosaic.version = 11 : i64} {
  func.func @_vae_kernel(%arg0: i32, %arg1: memref<8x784xf32, #tpu.memory_space<vmem>>, %arg2: memref<784x128xf32, #tpu.memory_space<vmem>>, %arg3: memref<1x128xf32, #tpu.memory_space<vmem>>, %arg4: memref<128x2xf32, #tpu.memory_space<vmem>>, %arg5: memref<1x2xf32, #tpu.memory_space<vmem>>, %arg6: memref<128x2xf32, #tpu.memory_space<vmem>>, %arg7: memref<1x2xf32, #tpu.memory_space<vmem>>, %arg8: memref<2x128xf32, #tpu.memory_space<vmem>>, %arg9: memref<1x128xf32, #tpu.memory_space<vmem>>, %arg10: memref<128x784xf32, #tpu.memory_space<vmem>>, %arg11: memref<1x784xf32, #tpu.memory_space<vmem>>, %arg12: memref<8x2xf32, #tpu.memory_space<vmem>>, %arg13: memref<8x784xf32, #tpu.memory_space<vmem>>, %arg14: memref<8x4xf32, #tpu.memory_space<vmem>>) attributes {dimension_semantics = [#tpu.dimension_semantics<parallel>], iteration_bounds = array<i64: 1>, scalar_prefetch = 0 : i64, scratch_operands = 0 : i64, tpu.core_type = #tpu.core_type<tc>, window_params = [{transform_indices = @transform_0, window_bounds = array<i64: 8, 784>}, {pipeline_mode = #tpu.pipeline_mode<synchronous>, transform_indices = @transform_1, window_bounds = array<i64: 784, 128>}, {pipeline_mode = #tpu.pipeline_mode<synchronous>, transform_indices = @transform_2, window_bounds = array<i64: 1, 128>}, {pipeline_mode = #tpu.pipeline_mode<synchronous>, transform_indices = @transform_3, window_bounds = array<i64: 128, 2>}, {pipeline_mode = #tpu.pipeline_mode<synchronous>, transform_indices = @transform_4, window_bounds = array<i64: 1, 2>}, {pipeline_mode = #tpu.pipeline_mode<synchronous>, transform_indices = @transform_5, window_bounds = array<i64: 128, 2>}, {pipeline_mode = #tpu.pipeline_mode<synchronous>, transform_indices = @transform_6, window_bounds = array<i64: 1, 2>}, {pipeline_mode = #tpu.pipeline_mode<synchronous>, transform_indices = @transform_7, window_bounds = array<i64: 2, 128>}, {pipeline_mode = #tpu.pipeline_mode<synchronous>, transform_indices = @transform_8, window_bounds = array<i64: 1, 128>}, {pipeline_mode = #tpu.pipeline_mode<synchronous>, transform_indices = @transform_9, window_bounds = array<i64: 128, 784>}, {pipeline_mode = #tpu.pipeline_mode<synchronous>, transform_indices = @transform_10, window_bounds = array<i64: 1, 784>}, {transform_indices = @transform_11, window_bounds = array<i64: 8, 2>}, {transform_indices = @transform_12, window_bounds = array<i64: 8, 784>}, {transform_indices = @transform_13, window_bounds = array<i64: 8, 4>}]} {
    %c0 = arith.constant 0 : index
    %c0_0 = arith.constant 0 : index
    %0 = vector.load %arg1[%c0, %c0_0] : memref<8x784xf32, #tpu.memory_space<vmem>>, vector<8x784xf32>
    %c0_1 = arith.constant 0 : index
    %c0_2 = arith.constant 0 : index
    %1 = vector.load %arg2[%c0_1, %c0_2] : memref<784x128xf32, #tpu.memory_space<vmem>>, vector<784x128xf32>
    %cst = arith.constant dense<0.000000e+00> : vector<8x128xf32>
    %2 = tpu.matmul %0, %1, %cst {dimension_numbers = #tpu.dot_dimension_numbers<[1], [0], [0], [1], [0, 0, 1, 1], [], []>} : vector<8x784xf32>, vector<784x128xf32>, vector<8x128xf32> -> vector<8x128xf32>
    %c0_3 = arith.constant 0 : index
    %c0_4 = arith.constant 0 : index
    %3 = vector.load %arg3[%c0_3, %c0_4] : memref<1x128xf32, #tpu.memory_space<vmem>>, vector<1x128xf32>
    %4 = vector.broadcast %3 : vector<1x128xf32> to vector<8x128xf32>
    %5 = arith.addf %2, %4 : vector<8x128xf32>
    %cst_5 = arith.constant 0.000000e+00 : f32
    %6 = vector.broadcast %cst_5 : f32 to vector<8x128xf32>
    %7 = arith.maximumf %5, %6 : vector<8x128xf32>
    %c0_6 = arith.constant 0 : index
    %c0_7 = arith.constant 0 : index
    %8 = vector.load %arg4[%c0_6, %c0_7] : memref<128x2xf32, #tpu.memory_space<vmem>>, vector<128x2xf32>
    %cst_8 = arith.constant dense<0.000000e+00> : vector<8x2xf32>
    %9 = tpu.matmul %7, %8, %cst_8 {dimension_numbers = #tpu.dot_dimension_numbers<[1], [0], [0], [1], [0, 0, 1, 1], [], []>} : vector<8x128xf32>, vector<128x2xf32>, vector<8x2xf32> -> vector<8x2xf32>
    %c0_9 = arith.constant 0 : index
    %c0_10 = arith.constant 0 : index
    %10 = vector.load %arg5[%c0_9, %c0_10] : memref<1x2xf32, #tpu.memory_space<vmem>>, vector<1x2xf32>
    %11 = vector.broadcast %10 : vector<1x2xf32> to vector<8x2xf32>
    %12 = arith.addf %9, %11 : vector<8x2xf32>
    %c0_11 = arith.constant 0 : index
    %c0_12 = arith.constant 0 : index
    %13 = vector.load %arg6[%c0_11, %c0_12] : memref<128x2xf32, #tpu.memory_space<vmem>>, vector<128x2xf32>
    %cst_13 = arith.constant dense<0.000000e+00> : vector<8x2xf32>
    %14 = tpu.matmul %7, %13, %cst_13 {dimension_numbers = #tpu.dot_dimension_numbers<[1], [0], [0], [1], [0, 0, 1, 1], [], []>} : vector<8x128xf32>, vector<128x2xf32>, vector<8x2xf32> -> vector<8x2xf32>
    %c0_14 = arith.constant 0 : index
    %c0_15 = arith.constant 0 : index
    %15 = vector.load %arg7[%c0_14, %c0_15] : memref<1x2xf32, #tpu.memory_space<vmem>>, vector<1x2xf32>
    %16 = vector.broadcast %15 : vector<1x2xf32> to vector<8x2xf32>
    %17 = arith.addf %14, %16 : vector<8x2xf32>
    %cst_16 = arith.constant 5.000000e-01 : f32
    %18 = vector.broadcast %cst_16 : f32 to vector<8x2xf32>
    %19 = arith.mulf %18, %17 : vector<8x2xf32>
    %20 = math.exp %19 : vector<8x2xf32>
    %c0_17 = arith.constant 0 : index
    %c0_18 = arith.constant 0 : index
    %21 = vector.load %arg12[%c0_17, %c0_18] : memref<8x2xf32, #tpu.memory_space<vmem>>, vector<8x2xf32>
    %22 = arith.mulf %21, %20 : vector<8x2xf32>
    %23 = arith.addf %12, %22 : vector<8x2xf32>
    %24 = vector.extract_strided_slice %23 {offsets = [0, 0], sizes = [8, 1], strides = [1, 1]} : vector<8x2xf32> to vector<8x1xf32>
    %c0_19 = arith.constant 0 : index
    %c0_20 = arith.constant 0 : index
    %25 = vector.load %arg8[%c0_19, %c0_20] : memref<2x128xf32, #tpu.memory_space<vmem>>, vector<1x128xf32>
    %26 = vector.broadcast %24 : vector<8x1xf32> to vector<8x128xf32>
    %27 = vector.broadcast %25 : vector<1x128xf32> to vector<8x128xf32>
    %28 = arith.mulf %26, %27 : vector<8x128xf32>
    %29 = vector.extract_strided_slice %23 {offsets = [0, 1], sizes = [8, 1], strides = [1, 1]} : vector<8x2xf32> to vector<8x1xf32>
    %c1 = arith.constant 1 : index
    %c0_21 = arith.constant 0 : index
    %30 = vector.load %arg8[%c1, %c0_21] : memref<2x128xf32, #tpu.memory_space<vmem>>, vector<1x128xf32>
    %31 = vector.broadcast %29 : vector<8x1xf32> to vector<8x128xf32>
    %32 = vector.broadcast %30 : vector<1x128xf32> to vector<8x128xf32>
    %33 = arith.mulf %31, %32 : vector<8x128xf32>
    %34 = arith.addf %28, %33 : vector<8x128xf32>
    %c0_22 = arith.constant 0 : index
    %c0_23 = arith.constant 0 : index
    %35 = vector.load %arg9[%c0_22, %c0_23] : memref<1x128xf32, #tpu.memory_space<vmem>>, vector<1x128xf32>
    %36 = vector.broadcast %35 : vector<1x128xf32> to vector<8x128xf32>
    %37 = arith.addf %34, %36 : vector<8x128xf32>
    %cst_24 = arith.constant 0.000000e+00 : f32
    %38 = vector.broadcast %cst_24 : f32 to vector<8x128xf32>
    %39 = arith.maximumf %37, %38 : vector<8x128xf32>
    %c0_25 = arith.constant 0 : index
    %c0_26 = arith.constant 0 : index
    %40 = vector.load %arg10[%c0_25, %c0_26] : memref<128x784xf32, #tpu.memory_space<vmem>>, vector<128x784xf32>
    %cst_27 = arith.constant dense<0.000000e+00> : vector<8x784xf32>
    %41 = tpu.matmul %39, %40, %cst_27 {dimension_numbers = #tpu.dot_dimension_numbers<[1], [0], [0], [1], [0, 0, 1, 1], [], []>} : vector<8x128xf32>, vector<128x784xf32>, vector<8x784xf32> -> vector<8x784xf32>
    %c0_28 = arith.constant 0 : index
    %c0_29 = arith.constant 0 : index
    %42 = vector.load %arg11[%c0_28, %c0_29] : memref<1x784xf32, #tpu.memory_space<vmem>>, vector<1x784xf32>
    %43 = vector.broadcast %42 : vector<1x784xf32> to vector<8x784xf32>
    %44 = arith.addf %41, %43 : vector<8x784xf32>
    %cst_30 = arith.constant 5.000000e-01 : f32
    %45 = vector.broadcast %cst_30 : f32 to vector<8x784xf32>
    %46 = arith.mulf %45, %44 : vector<8x784xf32>
    %47 = math.tanh %46 : vector<8x784xf32>
    %cst_31 = arith.constant 1.000000e+00 : f32
    %48 = vector.broadcast %cst_31 : f32 to vector<8x784xf32>
    %49 = arith.addf %47, %48 : vector<8x784xf32>
    %cst_32 = arith.constant 5.000000e-01 : f32
    %50 = vector.broadcast %cst_32 : f32 to vector<8x784xf32>
    %51 = arith.mulf %50, %49 : vector<8x784xf32>
    %c0_33 = arith.constant 0 : index
    %c0_34 = arith.constant 0 : index
    %52 = vector.load %arg13[%c0_33, %c0_34] : memref<8x784xf32, #tpu.memory_space<vmem>>, vector<8x784xf32>
    tpu.vector_store %arg13[%c0_33, %c0_34], %51 {strides = array<i32>} : memref<8x784xf32, #tpu.memory_space<vmem>>, vector<8x784xf32>,
    %53 = tpu.concatenate %12, %17 in 1 : vector<8x2xf32>, vector<8x2xf32> -> vector<8x4xf32>
    %c0_35 = arith.constant 0 : index
    %c0_36 = arith.constant 0 : index
    %54 = vector.load %arg14[%c0_35, %c0_36] : memref<8x4xf32, #tpu.memory_space<vmem>>, vector<8x4xf32>
    tpu.vector_store %arg14[%c0_35, %c0_36], %53 {strides = array<i32>} : memref<8x4xf32, #tpu.memory_space<vmem>>, vector<8x4xf32>,
    return
  }
  func.func @transform_0(%arg0: i32) -> (i32, i32) {
    %c0_i32 = arith.constant 0 : i32
    %c0_i32_0 = arith.constant 0 : i32
    return %arg0, %c0_i32 : i32, i32
  }
  func.func @transform_1(%arg0: i32) -> (i32, i32) {
    %c0_i32 = arith.constant 0 : i32
    %c0_i32_0 = arith.constant 0 : i32
    %c0_i32_1 = arith.constant 0 : i32
    return %c0_i32, %c0_i32_0 : i32, i32
  }
  func.func @transform_2(%arg0: i32) -> (i32, i32) {
    %c0_i32 = arith.constant 0 : i32
    %c0_i32_0 = arith.constant 0 : i32
    %c0_i32_1 = arith.constant 0 : i32
    return %c0_i32, %c0_i32_0 : i32, i32
  }
  func.func @transform_3(%arg0: i32) -> (i32, i32) {
    %c0_i32 = arith.constant 0 : i32
    %c0_i32_0 = arith.constant 0 : i32
    %c0_i32_1 = arith.constant 0 : i32
    return %c0_i32, %c0_i32_0 : i32, i32
  }
  func.func @transform_4(%arg0: i32) -> (i32, i32) {
    %c0_i32 = arith.constant 0 : i32
    %c0_i32_0 = arith.constant 0 : i32
    %c0_i32_1 = arith.constant 0 : i32
    return %c0_i32, %c0_i32_0 : i32, i32
  }
  func.func @transform_5(%arg0: i32) -> (i32, i32) {
    %c0_i32 = arith.constant 0 : i32
    %c0_i32_0 = arith.constant 0 : i32
    %c0_i32_1 = arith.constant 0 : i32
    return %c0_i32, %c0_i32_0 : i32, i32
  }
  func.func @transform_6(%arg0: i32) -> (i32, i32) {
    %c0_i32 = arith.constant 0 : i32
    %c0_i32_0 = arith.constant 0 : i32
    %c0_i32_1 = arith.constant 0 : i32
    return %c0_i32, %c0_i32_0 : i32, i32
  }
  func.func @transform_7(%arg0: i32) -> (i32, i32) {
    %c0_i32 = arith.constant 0 : i32
    %c0_i32_0 = arith.constant 0 : i32
    %c0_i32_1 = arith.constant 0 : i32
    return %c0_i32, %c0_i32_0 : i32, i32
  }
  func.func @transform_8(%arg0: i32) -> (i32, i32) {
    %c0_i32 = arith.constant 0 : i32
    %c0_i32_0 = arith.constant 0 : i32
    %c0_i32_1 = arith.constant 0 : i32
    return %c0_i32, %c0_i32_0 : i32, i32
  }
  func.func @transform_9(%arg0: i32) -> (i32, i32) {
    %c0_i32 = arith.constant 0 : i32
    %c0_i32_0 = arith.constant 0 : i32
    %c0_i32_1 = arith.constant 0 : i32
    return %c0_i32, %c0_i32_0 : i32, i32
  }
  func.func @transform_10(%arg0: i32) -> (i32, i32) {
    %c0_i32 = arith.constant 0 : i32
    %c0_i32_0 = arith.constant 0 : i32
    %c0_i32_1 = arith.constant 0 : i32
    return %c0_i32, %c0_i32_0 : i32, i32
  }
  func.func @transform_11(%arg0: i32) -> (i32, i32) {
    %c0_i32 = arith.constant 0 : i32
    %c0_i32_0 = arith.constant 0 : i32
    return %arg0, %c0_i32 : i32, i32
  }
  func.func @transform_12(%arg0: i32) -> (i32, i32) {
    %c0_i32 = arith.constant 0 : i32
    %c0_i32_0 = arith.constant 0 : i32
    return %arg0, %c0_i32 : i32, i32
  }
  func.func @transform_13(%arg0: i32) -> (i32, i32) {
    %c0_i32 = arith.constant 0 : i32
    %c0_i32_0 = arith.constant 0 : i32
    return %arg0, %c0_i32 : i32, i32
  }
}

</mosaic_0001>

<llo_original>
// kernel: vae_forward.1
$region0: #{vae_forward.1}
  #allocation0 [shape = 'u32[]', space=smem, size = 0x4, offset = 0x4, fixed_abs, tag = 'smem constant byte address 0x4 - core index']
  #allocation1 [shape = 'u32[144,128]{1,0:T(1,128)}', space=vmem, size = 0x12000, scoped, tag = 'internal scratch']
  %s0 = inlined_call_operand.vmem [shape: f32[8,784], index: 0, kind: input, shape index: {}]
  %s1 = inlined_call_operand.vmem [shape: f32[784,128], index: 1, kind: input, shape index: {}]
  %s2 = inlined_call_operand.vmem [shape: f32[1,128], index: 2, kind: input, shape index: {}]
  %s3 = inlined_call_operand.vmem [shape: f32[128,2], index: 3, kind: input, shape index: {}]
  %s4 = inlined_call_operand.vmem [shape: f32[1,2], index: 4, kind: input, shape index: {}]
  %s5 = inlined_call_operand.vmem [shape: f32[128,2], index: 5, kind: input, shape index: {}]
  %s6 = inlined_call_operand.vmem [shape: f32[1,2], index: 6, kind: input, shape index: {}]
  %s7 = inlined_call_operand.vmem [shape: f32[2,128], index: 7, kind: input, shape index: {}]
  %s8 = inlined_call_operand.vmem [shape: f32[1,128], index: 8, kind: input, shape index: {}]
  %s9 = inlined_call_operand.vmem [shape: f32[128,784], index: 9, kind: input, shape index: {}]
  %s10 = inlined_call_operand.vmem [shape: f32[1,784], index: 10, kind: input, shape index: {}]
  %s11 = inlined_call_operand.vmem [shape: f32[8,2], index: 11, kind: input, shape index: {}]
  %s12 = inlined_call_operand.vmem [shape: f32[8,784], index: 12, kind: output, shape index: {0}]
  %s13 = inlined_call_operand.vmem [shape: f32[8,4], index: 13, kind: output, shape index: {1}]
  %14 = xla_tuple %s12, %s13
  %s15 = sld [smem:[#allocation0]]
  $region66: #{vae_forward.1} parent=0
    _
  %s17 = ssub.s32 1, %s15
  %s18 = scalar_select 0, %s17, %s15
  // Predicated region
  $region2: #{vae_forward.1} parent=0 // pred_check
    _
  $region3: #{vae_forward.1} parent=0 // pred_check_branch
    %20 = sbr.rel (0) target = $region5
  $region4: #{vae_forward.1} parent=0 // pred_region
    _
  $region5: #{vae_forward.1} parent=0 // pred_fallthru
    _
  // Predicated region
  $region6: #{vae_forward.1} parent=0 // pred_check
    _
  $region7: #{vae_forward.1} parent=0 // pred_check_branch
    %22 = sbr.rel (0) target = $region9
  $region8: #{vae_forward.1} parent=0 // pred_region
    _
  $region9: #{vae_forward.1} parent=0 // pred_fallthru
    _
  // Predicated region
  $region10: #{vae_forward.1} parent=0 // pred_check
    _
  $region11: #{vae_forward.1} parent=0 // pred_check_branch
    %24 = sbr.rel (0) target = $region13
  $region12: #{vae_forward.1} parent=0 // pred_region
    _
  $region13: #{vae_forward.1} parent=0 // pred_fallthru
    _
  // Predicated region
  $region14: #{vae_forward.1} parent=0 // pred_check
    _
  $region15: #{vae_forward.1} parent=0 // pred_check_branch
    %26 = sbr.rel (0) target = $region17
  $region16: #{vae_forward.1} parent=0 // pred_region
    _
  $region17: #{vae_forward.1} parent=0 // pred_fallthru
    _
  // Predicated region
  $region18: #{vae_forward.1} parent=0 // pred_check
    _
  $region19: #{vae_forward.1} parent=0 // pred_check_branch
    %28 = sbr.rel (0) target = $region21
  $region20: #{vae_forward.1} parent=0 // pred_region
    _
  $region21: #{vae_forward.1} parent=0 // pred_fallthru
    _
  // Predicated region
  $region22: #{vae_forward.1} parent=0 // pred_check
    _
  $region23: #{vae_forward.1} parent=0 // pred_check_branch
    %30 = sbr.rel (0) target = $region25
  $region24: #{vae_forward.1} parent=0 // pred_region
    _
  $region25: #{vae_forward.1} parent=0 // pred_fallthru
    _
  // Predicated region
  $region26: #{vae_forward.1} parent=0 // pred_check
    _
  $region27: #{vae_forward.1} parent=0 // pred_check_branch
    %32 = sbr.rel (0) target = $region29
  $region28: #{vae_forward.1} parent=0 // pred_region
    _
  $region29: #{vae_forward.1} parent=0 // pred_fallthru
    _
  // Predicated region
  $region30: #{vae_forward.1} parent=0 // pred_check
    _
  $region31: #{vae_forward.1} parent=0 // pred_check_branch
    %34 = sbr.rel (0) target = $region33
  $region32: #{vae_forward.1} parent=0 // pred_region
    _
  $region33: #{vae_forward.1} parent=0 // pred_fallthru
    _
  // Predicated region
  $region34: #{vae_forward.1} parent=0 // pred_check
    _
  $region35: #{vae_forward.1} parent=0 // pred_check_branch
    %36 = sbr.rel (0) target = $region37
  $region36: #{vae_forward.1} parent=0 // pred_region
    _
  $region37: #{vae_forward.1} parent=0 // pred_fallthru
    _
  // Predicated region
  $region38: #{vae_forward.1} parent=0 // pred_check
    _
  $region39: #{vae_forward.1} parent=0 // pred_check_branch
    %38 = sbr.rel (0) target = $region41
  $region40: #{vae_forward.1} parent=0 // pred_region
    _
  $region41: #{vae_forward.1} parent=0 // pred_fallthru
    _
  // Predicated region
  $region42: #{vae_forward.1} parent=0 // pred_check
    _
  $region43: #{vae_forward.1} parent=0 // pred_check_branch
    %40 = sbr.rel (0) target = $region45
  $region44: #{vae_forward.1} parent=0 // pred_region
    _
  $region45: #{vae_forward.1} parent=0 // pred_fallthru
    _
  // Predicated region
  $region46: #{vae_forward.1} parent=0 // pred_check
    _
  $region47: #{vae_forward.1} parent=0 // pred_check_branch
    %42 = sbr.rel (0) target = $region49
  $region48: #{vae_forward.1} parent=0 // pred_region
    _
  $region49: #{vae_forward.1} parent=0 // pred_fallthru
    _
  %v43 = vld [vmem:[%s0] sm:$0xff]
  %v44 = vld [vmem:[%s0 + $0x8] sm:$0xff]
  %v45 = vld [vmem:[%s0 + $0x10] sm:$0xff]
  %v46 = vld [vmem:[%s0 + $0x18] sm:$0xff]
  %v47 = vld [vmem:[%s0 + $0x20] sm:$0xff]
  %v48 = vld [vmem:[%s0 + $0x28] sm:$0xff]
  %v49 = vld [vmem:[%s0 + $0x30] sm:$0xff]
  %v50 = vld [vmem:[%s1] sm:$0xff]
  %v51 = vld [vmem:[%s1 + $0x8] sm:$0xff]
  %v52 = vld [vmem:[%s1 + $0x10] sm:$0xff]
  %v53 = vld [vmem:[%s1 + $0x18] sm:$0xff]
  %v54 = vld [vmem:[%s1 + $0x20] sm:$0xff]
  %v55 = vld [vmem:[%s1 + $0x28] sm:$0xff]
  %v56 = vld [vmem:[%s1 + $0x30] sm:$0xff]
  %v57 = vld [vmem:[%s1 + $0x38] sm:$0xff]
  %v58 = vld [vmem:[%s1 + $0x40] sm:$0xff]
  %v59 = vld [vmem:[%s1 + $0x48] sm:$0xff]
  %v60 = vld [vmem:[%s1 + $0x50] sm:$0xff]
  %v61 = vld [vmem:[%s1 + $0x58] sm:$0xff]
  %v62 = vld [vmem:[%s1 + $0x60] sm:$0xff]
  %v63 = vld [vmem:[%s1 + $0x68] sm:$0xff]
  %v64 = vld [vmem:[%s1 + $0x70] sm:$0xff]
  %v65 = vld [vmem:[%s1 + $0x78] sm:$0xff]
  %v66 = vld [vmem:[%s1 + $0x80] sm:$0xff]
  %v67 = vld [vmem:[%s1 + $0x88] sm:$0xff]
  %v68 = vld [vmem:[%s1 + $0x90] sm:$0xff]
  %v69 = vld [vmem:[%s1 + $0x98] sm:$0xff]
  %v70 = vld [vmem:[%s1 + $0xa0] sm:$0xff]
  %v71 = vld [vmem:[%s1 + $0xa8] sm:$0xff]
  %v72 = vld [vmem:[%s1 + $0xb0] sm:$0xff]
  %v73 = vld [vmem:[%s1 + $0xb8] sm:$0xff]
  %v74 = vld [vmem:[%s1 + $0xc0] sm:$0xff]
  %v75 = vld [vmem:[%s1 + $0xc8] sm:$0xff]
  %v76 = vld [vmem:[%s1 + $0xd0] sm:$0xff]
  %v77 = vld [vmem:[%s1 + $0xd8] sm:$0xff]
  %v78 = vld [vmem:[%s1 + $0xe0] sm:$0xff]
  %v79 = vld [vmem:[%s1 + $0xe8] sm:$0xff]
  %v80 = vld [vmem:[%s1 + $0xf0] sm:$0xff]
  %v81 = vld [vmem:[%s1 + $0xf8] sm:$0xff]
  %v82 = vld [vmem:[%s1 + $0x100] sm:$0xff]
  %v83 = vld [vmem:[%s1 + $0x108] sm:$0xff]
  %v84 = vld [vmem:[%s1 + $0x110] sm:$0xff]
  %v85 = vld [vmem:[%s1 + $0x118] sm:$0xff]
  %v86 = vld [vmem:[%s1 + $0x120] sm:$0xff]
  %v87 = vld [vmem:[%s1 + $0x128] sm:$0xff]
  %v88 = vld [vmem:[%s1 + $0x130] sm:$0xff]
  %v89 = vld [vmem:[%s1 + $0x138] sm:$0xff]
  %v90 = vld [vmem:[%s1 + $0x140] sm:$0xff]
  %v91 = vld [vmem:[%s1 + $0x148] sm:$0xff]
  %v92 = vld [vmem:[%s1 + $0x150] sm:$0xff]
  %v93 = vld [vmem:[%s1 + $0x158] sm:$0xff]
  %v94 = vld [vmem:[%s1 + $0x160] sm:$0xff]
  %v95 = vld [vmem:[%s1 + $0x168] sm:$0xff]
  %v96 = vld [vmem:[%s1 + $0x170] sm:$0xff]
  %v97 = vld [vmem:[%s1 + $0x178] sm:$0xff]
  %v98 = vld [vmem:[%s1 + $0x180] sm:$0xff]
  %v99 = vld [vmem:[%s1 + $0x188] sm:$0xff]
  %v100 = vld [vmem:[%s1 + $0x190] sm:$0xff]
  %v101 = vld [vmem:[%s1 + $0x198] sm:$0xff]
  %v102 = vld [vmem:[%s1 + $0x1a0] sm:$0xff]
  %v103 = vld [vmem:[%s1 + $0x1a8] sm:$0xff]
  %v104 = vld [vmem:[%s1 + $0x1b0] sm:$0xff]
  %v105 = vld [vmem:[%s1 + $0x1b8] sm:$0xff]
  %v106 = vld [vmem:[%s1 + $0x1c0] sm:$0xff]
  %v107 = vld [vmem:[%s1 + $0x1c8] sm:$0xff]
  %v108 = vld [vmem:[%s1 + $0x1d0] sm:$0xff]
  %v109 = vld [vmem:[%s1 + $0x1d8] sm:$0xff]
  %v110 = vld [vmem:[%s1 + $0x1e0] sm:$0xff]
  %v111 = vld [vmem:[%s1 + $0x1e8] sm:$0xff]
  %v112 = vld [vmem:[%s1 + $0x1f0] sm:$0xff]
  %v113 = vld [vmem:[%s1 + $0x1f8] sm:$0xff]
  %v114 = vld [vmem:[%s1 + $0x200] sm:$0xff]
  %v115 = vld [vmem:[%s1 + $0x208] sm:$0xff]
  %v116 = vld [vmem:[%s1 + $0x210] sm:$0xff]
  %v117 = vld [vmem:[%s1 + $0x218] sm:$0xff]
  %v118 = vld [vmem:[%s1 + $0x220] sm:$0xff]
  %v119 = vld [vmem:[%s1 + $0x228] sm:$0xff]
  %v120 = vld [vmem:[%s1 + $0x230] sm:$0xff]
  %v121 = vld [vmem:[%s1 + $0x238] sm:$0xff]
  %v122 = vld [vmem:[%s1 + $0x240] sm:$0xff]
  %v123 = vld [vmem:[%s1 + $0x248] sm:$0xff]
  %v124 = vld [vmem:[%s1 + $0x250] sm:$0xff]
  %v125 = vld [vmem:[%s1 + $0x258] sm:$0xff]
  %v126 = vld [vmem:[%s1 + $0x260] sm:$0xff]
  %v127 = vld [vmem:[%s1 + $0x268] sm:$0xff]
  %v128 = vld [vmem:[%s1 + $0x270] sm:$0xff]
  %v129 = vld [vmem:[%s1 + $0x278] sm:$0xff]
  %v130 = vld [vmem:[%s1 + $0x280] sm:$0xff]
  %v131 = vld [vmem:[%s1 + $0x288] sm:$0xff]
  %v132 = vld [vmem:[%s1 + $0x290] sm:$0xff]
  %v133 = vld [vmem:[%s1 + $0x298] sm:$0xff]
  %v134 = vld [vmem:[%s1 + $0x2a0] sm:$0xff]
  %v135 = vld [vmem:[%s1 + $0x2a8] sm:$0xff]
  %v136 = vld [vmem:[%s1 + $0x2b0] sm:$0xff]
  %v137 = vld [vmem:[%s1 + $0x2b8] sm:$0xff]
  %v138 = vld [vmem:[%s1 + $0x2c0] sm:$0xff]
  %v139 = vld [vmem:[%s1 + $0x2c8] sm:$0xff]
  %v140 = vld [vmem:[%s1 + $0x2d0] sm:$0xff]
  %v141 = vld [vmem:[%s1 + $0x2d8] sm:$0xff]
  %v142 = vld [vmem:[%s1 + $0x2e0] sm:$0xff]
  %v143 = vld [vmem:[%s1 + $0x2e8] sm:$0xff]
  %v144 = vld [vmem:[%s1 + $0x2f0] sm:$0xff]
  %v145 = vld [vmem:[%s1 + $0x2f8] sm:$0xff]
  %v146 = vld [vmem:[%s1 + $0x300] sm:$0xff]
  %v147 = vld [vmem:[%s1 + $0x308] sm:$0xff]
  %v148 = vld [vmem:[%s2] sm:$0x1]
  %v150 = vlaneseq
  %v151 = vshrl.u32 %v150, 7
  %v152 = vsub.s32 0, %v151
  %v153 = vrot.slane %v148, %v152
  %vm155 = vcmask 130048
  %v157 = vsel %vm155, %v49, 0
  %159 = vmatprep.subr.mxu0 0.0
  %160 = vmatpush1.msra.mxu0 %v50
  %161 = vmatprep.subr.mxu0 0.0
  %162 = vmatpush1.msra.mxu0 %v51
  %163 = vmatprep.subr.mxu0 0.0
  %164 = vmatpush1.msra.mxu0 %v52
  %165 = vmatprep.subr.mxu0 0.0
  %166 = vmatpush1.msra.mxu0 %v53
  %167 = vmatprep.subr.mxu0 0.0
  %168 = vmatpush1.msra.mxu0 %v54
  %169 = vmatprep.subr.mxu0 0.0
  %170 = vmatpush1.msra.mxu0 %v55
  %171 = vmatprep.subr.mxu0 0.0
  %172 = vmatpush1.msra.mxu0 %v56
  %173 = vmatprep.subr.mxu0 0.0
  %174 = vmatpush1.msra.mxu0 %v57
  %175 = vmatprep.subr.mxu0 0.0
  %176 = vmatpush1.msra.mxu0 %v58
  %177 = vmatprep.subr.mxu0 0.0
  %178 = vmatpush1.msra.mxu0 %v59
  %179 = vmatprep.subr.mxu0 0.0
  %180 = vmatpush1.msra.mxu0 %v60
  %181 = vmatprep.subr.mxu0 0.0
  %182 = vmatpush1.msra.mxu0 %v61
  %183 = vmatprep.subr.mxu0 0.0
  %184 = vmatpush1.msra.mxu0 %v62
  %185 = vmatprep.subr.mxu0 0.0
  %186 = vmatpush1.msra.mxu0 %v63
  %187 = vmatprep.subr.mxu0 0.0
  %188 = vmatpush1.msra.mxu0 %v64
  %189 = vmatprep.subr.mxu0 0.0
  %190 = vmatpush1.msra.mxu0 %v65
  %191 = vmatprep.subr.mxu0 0.0
  %192 = vmatpush1.msra.mxu0 %v66
  %193 = vmatprep.subr.mxu0 0.0
  %194 = vmatpush1.msra.mxu0 %v67
  %195 = vmatprep.subr.mxu0 0.0
  %196 = vmatpush1.msra.mxu0 %v68
  %197 = vmatprep.subr.mxu0 0.0
  %198 = vmatpush1.msra.mxu0 %v69
  %199 = vmatprep.subr.mxu0 0.0
  %200 = vmatpush1.msra.mxu0 %v70
  %201 = vmatprep.subr.mxu0 0.0
  %202 = vmatpush1.msra.mxu0 %v71
  %203 = vmatprep.subr.mxu0 0.0
  %204 = vmatpush1.msra.mxu0 %v72
  %205 = vmatprep.subr.mxu0 0.0
  %206 = vmatpush1.msra.mxu0 %v73
  %207 = vmatprep.subr.mxu0 0.0
  %208 = vmatpush1.msra.mxu0 %v74
  %209 = vmatprep.subr.mxu0 0.0
  %210 = vmatpush1.msra.mxu0 %v75
  %211 = vmatprep.subr.mxu0 0.0
  %212 = vmatpush1.msra.mxu0 %v76
  %213 = vmatprep.subr.mxu0 0.0
  %214 = vmatpush1.msra.mxu0 %v77
  %215 = vmatprep.subr.mxu0 0.0
  %216 = vmatpush1.msra.mxu0 %v78
  %217 = vmatprep.subr.mxu0 0.0
  %218 = vmatpush1.msra.mxu0 %v79
  %219 = vmatprep.subr.mxu0 0.0
  %220 = vmatpush1.msra.mxu0 %v80
  %221 = vmatprep.subr.mxu0 0.0
  %222 = vmatpush1.msra.mxu0 %v81
  %223 = vmatprep.mubr.f32.mxu0 %v44
  %224 = vmatmul.mubr.f32.gmra.mrb[0].mxu0 %v43
  %v225 = vpop.f32.mrb[0].mxu0
  %v226 = vadd.f32 %v153, %v225
  %v227 = vpop.f32.mrb[0].mxu0
  %228 = vdwg.mxu0
  %229 = vmatprep.subr.mxu0 0.0
  %230 = vmatpush1.msra.mxu0 %v82
  %231 = vmatprep.subr.mxu0 0.0
  %232 = vmatpush1.msra.mxu0 %v83
  %233 = vmatprep.subr.mxu0 0.0
  %234 = vmatpush1.msra.mxu0 %v84
  %235 = vmatprep.subr.mxu0 0.0
  %236 = vmatpush1.msra.mxu0 %v85
  %237 = vmatprep.subr.mxu0 0.0
  %238 = vmatpush1.msra.mxu0 %v86
  %239 = vmatprep.subr.mxu0 0.0
  %240 = vmatpush1.msra.mxu0 %v87
  %241 = vmatprep.subr.mxu0 0.0
  %242 = vmatpush1.msra.mxu0 %v88
  %243 = vmatprep.subr.mxu0 0.0
  %244 = vmatpush1.msra.mxu0 %v89
  %245 = vmatprep.subr.mxu0 0.0
  %246 = vmatpush1.msra.mxu0 %v90
  %247 = vmatprep.subr.mxu0 0.0
  %248 = vmatpush1.msra.mxu0 %v91
  %249 = vmatprep.subr.mxu0 0.0
  %250 = vmatpush1.msra.mxu0 %v92
  %251 = vmatprep.subr.mxu0 0.0
  %252 = vmatpush1.msra.mxu0 %v93
  %253 = vmatprep.subr.mxu0 0.0
  %254 = vmatpush1.msra.mxu0 %v94
  %255 = vmatprep.subr.mxu0 0.0
  %256 = vmatpush1.msra.mxu0 %v95
  %257 = vmatprep.subr.mxu0 0.0
  %258 = vmatpush1.msra.mxu0 %v96
  %259 = vmatprep.subr.mxu0 0.0
  %260 = vmatpush1.msra.mxu0 %v97
  %261 = vmatprep.subr.mxu0 0.0
  %262 = vmatpush1.msra.mxu0 %v98
  %263 = vmatprep.subr.mxu0 0.0
  %264 = vmatpush1.msra.mxu0 %v99
  %265 = vmatprep.subr.mxu0 0.0
  %266 = vmatpush1.msra.mxu0 %v100
  %267 = vmatprep.subr.mxu0 0.0
  %268 = vmatpush1.msra.mxu0 %v101
  %269 = vmatprep.subr.mxu0 0.0
  %270 = vmatpush1.msra.mxu0 %v102
  %271 = vmatprep.subr.mxu0 0.0
  %272 = vmatpush1.msra.mxu0 %v103
  %273 = vmatprep.subr.mxu0 0.0
  %274 = vmatpush1.msra.mxu0 %v104
  %275 = vmatprep.subr.mxu0 0.0
  %276 = vmatpush1.msra.mxu0 %v105
  %277 = vmatprep.subr.mxu0 0.0
  %278 = vmatpush1.msra.mxu0 %v106
  %279 = vmatprep.subr.mxu0 0.0
  %280 = vmatpush1.msra.mxu0 %v107
  %281 = vmatprep.subr.mxu0 0.0
  %282 = vmatpush1.msra.mxu0 %v108
  %283 = vmatprep.subr.mxu0 0.0
  %284 = vmatpush1.msra.mxu0 %v109
  %285 = vmatprep.subr.mxu0 0.0
  %286 = vmatpush1.msra.mxu0 %v110
  %287 = vmatprep.subr.mxu0 0.0
  %288 = vmatpush1.msra.mxu0 %v111
  %289 = vmatprep.subr.mxu0 0.0
  %290 = vmatpush1.msra.mxu0 %v112
  %291 = vmatprep.subr.mxu0 0.0
  %292 = vmatpush1.msra.mxu0 %v113
  %293 = vmatprep.mubr.f32.mxu0 %v46
  %294 = vmatmul.mubr.f32.gmra.mrb[0].mxu0 %v45
  %v295 = vpop.f32.mrb[0].mxu0
  %v296 = vadd.f32 %v226, %v295
  %v297 = vpop.f32.mrb[0].mxu0
  %298 = vdwg.mxu0
  %299 = vmatprep.subr.mxu0 0.0
  %300 = vmatpush1.msra.mxu0 %v114
  %301 = vmatprep.subr.mxu0 0.0
  %302 = vmatpush1.msra.mxu0 %v115
  %303 = vmatprep.subr.mxu0 0.0
  %304 = vmatpush1.msra.mxu0 %v116
  %305 = vmatprep.subr.mxu0 0.0
  %306 = vmatpush1.msra.mxu0 %v117
  %307 = vmatprep.subr.mxu0 0.0
  %308 = vmatpush1.msra.mxu0 %v118
  %309 = vmatprep.subr.mxu0 0.0
  %310 = vmatpush1.msra.mxu0 %v119
  %311 = vmatprep.subr.mxu0 0.0
  %312 = vmatpush1.msra.mxu0 %v120
  %313 = vmatprep.subr.mxu0 0.0
  %314 = vmatpush1.msra.mxu0 %v121
  %315 = vmatprep.subr.mxu0 0.0
  %316 = vmatpush1.msra.mxu0 %v122
  %317 = vmatprep.subr.mxu0 0.0
  %318 = vmatpush1.msra.mxu0 %v123
  %319 = vmatprep.subr.mxu0 0.0
  %320 = vmatpush1.msra.mxu0 %v124
  %321 = vmatprep.subr.mxu0 0.0
  %322 = vmatpush1.msra.mxu0 %v125
  %323 = vmatprep.subr.mxu0 0.0
  %324 = vmatpush1.msra.mxu0 %v126
  %325 = vmatprep.subr.mxu0 0.0
  %326 = vmatpush1.msra.mxu0 %v127
  %327 = vmatprep.subr.mxu0 0.0
  %328 = vmatpush1.msra.mxu0 %v128
  %329 = vmatprep.subr.mxu0 0.0
  %330 = vmatpush1.msra.mxu0 %v129
  %331 = vmatprep.subr.mxu0 0.0
  %332 = vmatpush1.msra.mxu0 %v130
  %333 = vmatprep.subr.mxu0 0.0
  %334 = vmatpush1.msra.mxu0 %v131
  %335 = vmatprep.subr.mxu0 0.0
  %336 = vmatpush1.msra.mxu0 %v132
  %337 = vmatprep.subr.mxu0 0.0
  %338 = vmatpush1.msra.mxu0 %v133
  %339 = vmatprep.subr.mxu0 0.0
  %340 = vmatpush1.msra.mxu0 %v134
  %341 = vmatprep.subr.mxu0 0.0
  %342 = vmatpush1.msra.mxu0 %v135
  %343 = vmatprep.subr.mxu0 0.0
  %344 = vmatpush1.msra.mxu0 %v136
  %345 = vmatprep.subr.mxu0 0.0
  %346 = vmatpush1.msra.mxu0 %v137
  %347 = vmatprep.subr.mxu0 0.0
  %348 = vmatpush1.msra.mxu0 %v138
  %349 = vmatprep.subr.mxu0 0.0
  %350 = vmatpush1.msra.mxu0 %v139
  %351 = vmatprep.subr.mxu0 0.0
  %352 = vmatpush1.msra.mxu0 %v140
  %353 = vmatprep.subr.mxu0 0.0
  %354 = vmatpush1.msra.mxu0 %v141
  %355 = vmatprep.subr.mxu0 0.0
  %356 = vmatpush1.msra.mxu0 %v142
  %357 = vmatprep.subr.mxu0 0.0
  %358 = vmatpush1.msra.mxu0 %v143
  %359 = vmatprep.subr.mxu0 0.0
  %360 = vmatpush1.msra.mxu0 %v144
  %361 = vmatprep.subr.mxu0 0.0
  %362 = vmatpush1.msra.mxu0 %v145
  %363 = vmatprep.mubr.f32.mxu0 %v48
  %364 = vmatmul.mubr.f32.gmra.mrb[0].mxu0 %v47
  %v365 = vpop.f32.mrb[0].mxu0
  %v366 = vadd.f32 %v296, %v365
  %v367 = vpop.f32.mrb[0].mxu0
  %368 = vdwg.mxu0
  %369 = vmatprep.subr.mxu0 0.0
  %370 = vmatpush1.msra.mxu0 %v146
  %371 = vmatprep.subr.mxu0 0.0
  %372 = vmatpush1.msra.mxu0 %v147
  %373 = vmatprep.subr.mxu0 0.0
  %374 = vmatpush1.msra.mxu0 0.0
  %375 = vmatprep.subr.mxu0 0.0
  %376 = vmatpush1.msra.mxu0 0.0
  %377 = vmatprep.subr.mxu0 0.0
  %378 = vmatpush1.msra.mxu0 0.0
  %379 = vmatprep.subr.mxu0 0.0
  %380 = vmatpush1.msra.mxu0 0.0
  %381 = vmatprep.subr.mxu0 0.0
  %382 = vmatpush1.msra.mxu0 0.0
  %383 = vmatprep.subr.mxu0 0.0
  %384 = vmatpush1.msra.mxu0 0.0
  %385 = vmatprep.subr.mxu0 0.0
  %386 = vmatpush1.msra.mxu0 0.0
  %387 = vmatprep.subr.mxu0 0.0
  %388 = vmatpush1.msra.mxu0 0.0
  %389 = vmatprep.subr.mxu0 0.0
  %390 = vmatpush1.msra.mxu0 0.0
  %391 = vmatprep.subr.mxu0 0.0
  %392 = vmatpush1.msra.mxu0 0.0
  %393 = vmatprep.subr.mxu0 0.0
  %394 = vmatpush1.msra.mxu0 0.0
  %395 = vmatprep.subr.mxu0 0.0
  %396 = vmatpush1.msra.mxu0 0.0
  %397 = vmatprep.subr.mxu0 0.0
  %398 = vmatpush1.msra.mxu0 0.0
  %399 = vmatprep.subr.mxu0 0.0
  %400 = vmatpush1.msra.mxu0 0.0
  %401 = vmatprep.subr.mxu0 0.0
  %402 = vmatpush1.msra.mxu0 0.0
  %403 = vmatprep.subr.mxu0 0.0
  %404 = vmatpush1.msra.mxu0 0.0
  %405 = vmatprep.subr.mxu0 0.0
  %406 = vmatpush1.msra.mxu0 0.0
  %407 = vmatprep.subr.mxu0 0.0
  %408 = vmatpush1.msra.mxu0 0.0
  %409 = vmatprep.subr.mxu0 0.0
  %410 = vmatpush1.msra.mxu0 0.0
  %411 = vmatprep.subr.mxu0 0.0
  %412 = vmatpush1.msra.mxu0 0.0
  %413 = vmatprep.subr.mxu0 0.0
  %414 = vmatpush1.msra.mxu0 0.0
  %415 = vmatprep.subr.mxu0 0.0
  %416 = vmatpush1.msra.mxu0 0.0
  %417 = vmatprep.subr.mxu0 0.0
  %418 = vmatpush1.msra.mxu0 0.0
  %419 = vmatprep.subr.mxu0 0.0
  %420 = vmatpush1.msra.mxu0 0.0
  %421 = vmatprep.subr.mxu0 0.0
  %422 = vmatpush1.msra.mxu0 0.0
  %423 = vmatprep.subr.mxu0 0.0
  %424 = vmatpush1.msra.mxu0 0.0
  %425 = vmatprep.subr.mxu0 0.0
  %426 = vmatpush1.msra.mxu0 0.0
  %427 = vmatprep.subr.mxu0 0.0
  %428 = vmatpush1.msra.mxu0 0.0
  %429 = vmatprep.subr.mxu0 0.0
  %430 = vmatpush1.msra.mxu0 0.0
  %431 = vmatprep.subr.mxu0 0.0
  %432 = vmatpush1.msra.mxu0 0.0
  %433 = vmatprep.mubr.f32.mxu0 0.0
  %434 = vmatmul.mubr.f32.gmra.mrb[0].mxu0 %v157
  %v435 = vpop.f32.mrb[0].mxu0
  %v436 = vadd.f32 %v366, %v435
  %v437 = vpop.f32.mrb[0].mxu0
  %438 = vdwg.mxu0
  %v439 = vmax.f32 %v436, 0.0
  %v440 = vld [vmem:[%s3] sm:$0xff]
  %v441 = vld [vmem:[%s3 + $0x8] sm:$0xff]
  %v442 = vld [vmem:[%s3 + $0x10] sm:$0xff]
  %v443 = vld [vmem:[%s3 + $0x18] sm:$0xff]
  %v444 = vld [vmem:[%s3 + $0x20] sm:$0xff]
  %v445 = vld [vmem:[%s3 + $0x28] sm:$0xff]
  %v446 = vld [vmem:[%s3 + $0x30] sm:$0xff]
  %v447 = vld [vmem:[%s3 + $0x38] sm:$0xff]
  %v448 = vld [vmem:[%s3 + $0x40] sm:$0xff]
  %v449 = vld [vmem:[%s3 + $0x48] sm:$0xff]
  %v450 = vld [vmem:[%s3 + $0x50] sm:$0xff]
  %v451 = vld [vmem:[%s3 + $0x58] sm:$0xff]
  %v452 = vld [vmem:[%s3 + $0x60] sm:$0xff]
  %v453 = vld [vmem:[%s3 + $0x68] sm:$0xff]
  %v454 = vld [vmem:[%s3 + $0x70] sm:$0xff]
  %v455 = vld [vmem:[%s3 + $0x78] sm:$0xff]
  %v456 = vld [vmem:[%s4] sm:$0x1]
  %v458 = vlaneseq
  %v459 = vshrl.u32 %v458, 7
  %v460 = vsub.s32 0, %v459
  %v461 = vrot.slane %v456, %v460
  %463 = vmatprep.subr.mxu0 0.0
  %464 = vmatpush1.msra.mxu0 %v440
  %465 = vmatprep.subr.mxu0 0.0
  %466 = vmatpush1.msra.mxu0 %v441
  %467 = vmatprep.subr.mxu0 0.0
  %468 = vmatpush1.msra.mxu0 %v442
  %469 = vmatprep.subr.mxu0 0.0
  %470 = vmatpush1.msra.mxu0 %v443
  %471 = vmatprep.subr.mxu0 0.0
  %472 = vmatpush1.msra.mxu0 %v444
  %473 = vmatprep.subr.mxu0 0.0
  %474 = vmatpush1.msra.mxu0 %v445
  %475 = vmatprep.subr.mxu0 0.0
  %476 = vmatpush1.msra.mxu0 %v446
  %477 = vmatprep.subr.mxu0 0.0
  %478 = vmatpush1.msra.mxu0 %v447
  %479 = vmatprep.subr.mxu0 0.0
  %480 = vmatpush1.msra.mxu0 %v448
  %481 = vmatprep.subr.mxu0 0.0
  %482 = vmatpush1.msra.mxu0 %v449
  %483 = vmatprep.subr.mxu0 0.0
  %484 = vmatpush1.msra.mxu0 %v450
  %485 = vmatprep.subr.mxu0 0.0
  %486 = vmatpush1.msra.mxu0 %v451
  %487 = vmatprep.subr.mxu0 0.0
  %488 = vmatpush1.msra.mxu0 %v452
  %489 = vmatprep.subr.mxu0 0.0
  %490 = vmatpush1.msra.mxu0 %v453
  %491 = vmatprep.subr.mxu0 0.0
  %492 = vmatpush1.msra.mxu0 %v454
  %493 = vmatprep.subr.mxu0 0.0
  %494 = vmatpush1.msra.mxu0 %v455
  %495 = vmatprep.subr.mxu0 0.0
  %496 = vmatpush1.msra.mxu0 0.0
  %497 = vmatprep.subr.mxu0 0.0
  %498 = vmatpush1.msra.mxu0 0.0
  %499 = vmatprep.subr.mxu0 0.0
  %500 = vmatpush1.msra.mxu0 0.0
  %501 = vmatprep.subr.mxu0 0.0
  %502 = vmatpush1.msra.mxu0 0.0
  %503 = vmatprep.subr.mxu0 0.0
  %504 = vmatpush1.msra.mxu0 0.0
  %505 = vmatprep.subr.mxu0 0.0
  %506 = vmatpush1.msra.mxu0 0.0
  %507 = vmatprep.subr.mxu0 0.0
  %508 = vmatpush1.msra.mxu0 0.0
  %509 = vmatprep.subr.mxu0 0.0
  %510 = vmatpush1.msra.mxu0 0.0
  %511 = vmatprep.subr.mxu0 0.0
  %512 = vmatpush1.msra.mxu0 0.0
  %513 = vmatprep.subr.mxu0 0.0
  %514 = vmatpush1.msra.mxu0 0.0
  %515 = vmatprep.subr.mxu0 0.0
  %516 = vmatpush1.msra.mxu0 0.0
  %517 = vmatprep.subr.mxu0 0.0
  %518 = vmatpush1.msra.mxu0 0.0
  %519 = vmatprep.subr.mxu0 0.0
  %520 = vmatpush1.msra.mxu0 0.0
  %521 = vmatprep.subr.mxu0 0.0
  %522 = vmatpush1.msra.mxu0 0.0
  %523 = vmatprep.subr.mxu0 0.0
  %524 = vmatpush1.msra.mxu0 0.0
  %525 = vmatprep.subr.mxu0 0.0
  %526 = vmatpush1.msra.mxu0 0.0
  %527 = vmatprep.mubr.f32.mxu0 0.0
  %528 = vmatmul.mubr.f32.gmra.mrb[0].mxu0 %v439
  %v529 = vpop.f32.mrb[0].mxu0
  %v530 = vadd.f32 %v461, %v529
  %v531 = vpop.f32.mrb[0].mxu0
  %532 = vdwg.mxu0
  %v533 = vld [vmem:[%s5] sm:$0xff]
  %v534 = vld [vmem:[%s5 + $0x8] sm:$0xff]
  %v535 = vld [vmem:[%s5 + $0x10] sm:$0xff]
  %v536 = vld [vmem:[%s5 + $0x18] sm:$0xff]
  %v537 = vld [vmem:[%s5 + $0x20] sm:$0xff]
  %v538 = vld [vmem:[%s5 + $0x28] sm:$0xff]
  %v539 = vld [vmem:[%s5 + $0x30] sm:$0xff]
  %v540 = vld [vmem:[%s5 + $0x38] sm:$0xff]
  %v541 = vld [vmem:[%s5 + $0x40] sm:$0xff]
  %v542 = vld [vmem:[%s5 + $0x48] sm:$0xff]
  %v543 = vld [vmem:[%s5 + $0x50] sm:$0xff]
  %v544 = vld [vmem:[%s5 + $0x58] sm:$0xff]
  %v545 = vld [vmem:[%s5 + $0x60] sm:$0xff]
  %v546 = vld [vmem:[%s5 + $0x68] sm:$0xff]
  %v547 = vld [vmem:[%s5 + $0x70] sm:$0xff]
  %v548 = vld [vmem:[%s5 + $0x78] sm:$0xff]
  %v549 = vld [vmem:[%s6] sm:$0x1]
  %v551 = vlaneseq
  %v552 = vshrl.u32 %v551, 7
  %v553 = vsub.s32 0, %v552
  %v554 = vrot.slane %v549, %v553
  %556 = vmatprep.subr.mxu0 0.0
  %557 = vmatpush1.msra.mxu0 %v533
  %558 = vmatprep.subr.mxu0 0.0
  %559 = vmatpush1.msra.mxu0 %v534
  %560 = vmatprep.subr.mxu0 0.0
  %561 = vmatpush1.msra.mxu0 %v535
  %562 = vmatprep.subr.mxu0 0.0
  %563 = vmatpush1.msra.mxu0 %v536
  %564 = vmatprep.subr.mxu0 0.0
  %565 = vmatpush1.msra.mxu0 %v537
  %566 = vmatprep.subr.mxu0 0.0
  %567 = vmatpush1.msra.mxu0 %v538
  %568 = vmatprep.subr.mxu0 0.0
  %569 = vmatpush1.msra.mxu0 %v539
  %570 = vmatprep.subr.mxu0 0.0
  %571 = vmatpush1.msra.mxu0 %v540
  %572 = vmatprep.subr.mxu0 0.0
  %573 = vmatpush1.msra.mxu0 %v541
  %574 = vmatprep.subr.mxu0 0.0
  %575 = vmatpush1.msra.mxu0 %v542
  %576 = vmatprep.subr.mxu0 0.0
  %577 = vmatpush1.msra.mxu0 %v543
  %578 = vmatprep.subr.mxu0 0.0
  %579 = vmatpush1.msra.mxu0 %v544
  %580 = vmatprep.subr.mxu0 0.0
  %581 = vmatpush1.msra.mxu0 %v545
  %582 = vmatprep.subr.mxu0 0.0
  %583 = vmatpush1.msra.mxu0 %v546
  %584 = vmatprep.subr.mxu0 0.0
  %585 = vmatpush1.msra.mxu0 %v547
  %586 = vmatprep.subr.mxu0 0.0
  %587 = vmatpush1.msra.mxu0 %v548
  %588 = vmatprep.subr.mxu0 0.0
  %589 = vmatpush1.msra.mxu0 0.0
  %590 = vmatprep.subr.mxu0 0.0
  %591 = vmatpush1.msra.mxu0 0.0
  %592 = vmatprep.subr.mxu0 0.0
  %593 = vmatpush1.msra.mxu0 0.0
  %594 = vmatprep.subr.mxu0 0.0
  %595 = vmatpush1.msra.mxu0 0.0
  %596 = vmatprep.subr.mxu0 0.0
  %597 = vmatpush1.msra.mxu0 0.0
  %598 = vmatprep.subr.mxu0 0.0
  %599 = vmatpush1.msra.mxu0 0.0
  %600 = vmatprep.subr.mxu0 0.0
  %601 = vmatpush1.msra.mxu0 0.0
  %602 = vmatprep.subr.mxu0 0.0
  %603 = vmatpush1.msra.mxu0 0.0
  %604 = vmatprep.subr.mxu0 0.0
  %605 = vmatpush1.msra.mxu0 0.0
  %606 = vmatprep.subr.mxu0 0.0
  %607 = vmatpush1.msra.mxu0 0.0
  %608 = vmatprep.subr.mxu0 0.0
  %609 = vmatpush1.msra.mxu0 0.0
  %610 = vmatprep.subr.mxu0 0.0
  %611 = vmatpush1.msra.mxu0 0.0
  %612 = vmatprep.subr.mxu0 0.0
  %613 = vmatpush1.msra.mxu0 0.0
  %614 = vmatprep.subr.mxu0 0.0
  %615 = vmatpush1.msra.mxu0 0.0
  %616 = vmatprep.subr.mxu0 0.0
  %617 = vmatpush1.msra.mxu0 0.0
  %618 = vmatprep.subr.mxu0 0.0
  %619 = vmatpush1.msra.mxu0 0.0
  %620 = vmatprep.mubr.f32.mxu0 0.0
  %621 = vmatmul.mubr.f32.gmra.mrb[0].mxu0 %v439
  %v622 = vpop.f32.mrb[0].mxu0
  %v623 = vadd.f32 %v554, %v622
  %v624 = vpop.f32.mrb[0].mxu0
  %625 = vdwg.mxu0
  %v626 = vmul.f32 %v623, 0.5
  %v627 = vmul.f32 %v626, 1.442695
  %v628 = vpow.pop %v627
  %v629 = vld [vmem:[%s11] sm:$0xff]
  %v630 = vmul.f32 %v629, %v628
  %v631 = vadd.f32 %v530, %v630
  %v632 = vld [vmem:[%s7] sm:$0x1]
  %634 = vset.pattern.permute.xlu0 0
  %635 = vperm.xlu0 %634, %v631
  %v636 = vpop.permute.xlu0 %635
  %v638 = vlaneseq
  %v639 = vshrl.u32 %v638, 7
  %v640 = vsub.s32 0, %v639
  %v641 = vrot.slane %v632, %v640
  %v642 = vmul.f32 %v636, %v641
  %v643 = vld [vmem:[%s7 + $0x1] sm:$0x1]
  %644 = vset.pattern.permute.xlu0 1
  %645 = vperm.xlu0 %644, %v631
  %v646 = vpop.permute.xlu0 %645
  %v648 = vlaneseq
  %v649 = vshrl.u32 %v648, 7
  %v650 = vsub.s32 0, %v649
  %v651 = vrot.slane %v643, %v650
  %v652 = vmul.f32 %v646, %v651
  %v653 = vadd.f32 %v642, %v652
  %v654 = vld [vmem:[%s8] sm:$0x1]
  %v656 = vlaneseq
  %v657 = vshrl.u32 %v656, 7
  %v658 = vsub.s32 0, %v657
  %v659 = vrot.slane %v654, %v658
  %v661 = vadd.f32 %v653, %v659
  %v662 = vmax.f32 %v661, 0.0
  %v663 = vld [vmem:[%s9] sm:$0xff]
  %v664 = vld [vmem:[%s9 + $0x8] sm:$0xff]
  %v665 = vld [vmem:[%s9 + $0x10] sm:$0xff]
  %v666 = vld [vmem:[%s9 + $0x18] sm:$0xff]
  %v667 = vld [vmem:[%s9 + $0x20] sm:$0xff]
  %v668 = vld [vmem:[%s9 + $0x28] sm:$0xff]
  %v669 = vld [vmem:[%s9 + $0x30] sm:$0xff]
  %v670 = vld [vmem:[%s9 + $0x38] sm:$0xff]
  %v671 = vld [vmem:[%s9 + $0x40] sm:$0xff]
  %v672 = vld [vmem:[%s9 + $0x48] sm:$0xff]
  %v673 = vld [vmem:[%s9 + $0x50] sm:$0xff]
  %v674 = vld [vmem:[%s9 + $0x58] sm:$0xff]
  %v675 = vld [vmem:[%s9 + $0x60] sm:$0xff]
  %v676 = vld [vmem:[%s9 + $0x68] sm:$0xff]
  %v677 = vld [vmem:[%s9 + $0x70] sm:$0xff]
  %v678 = vld [vmem:[%s9 + $0x78] sm:$0xff]
  %v679 = vld [vmem:[%s9 + $0x80] sm:$0xff]
  %v680 = vld [vmem:[%s9 + $0x88] sm:$0xff]
  %v681 = vld [vmem:[%s9 + $0x90] sm:$0xff]
  %v682 = vld [vmem:[%s9 + $0x98] sm:$0xff]
  %v683 = vld [vmem:[%s9 + $0xa0] sm:$0xff]
  %v684 = vld [vmem:[%s9 + $0xa8] sm:$0xff]
  %v685 = vld [vmem:[%s9 + $0xb0] sm:$0xff]
  %v686 = vld [vmem:[%s9 + $0xb8] sm:$0xff]
  %v687 = vld [vmem:[%s9 + $0xc0] sm:$0xff]
  %v688 = vld [vmem:[%s9 + $0xc8] sm:$0xff]
  %v689 = vld [vmem:[%s9 + $0xd0] sm:$0xff]
  %v690 = vld [vmem:[%s9 + $0xd8] sm:$0xff]
  %v691 = vld [vmem:[%s9 + $0xe0] sm:$0xff]
  %v692 = vld [vmem:[%s9 + $0xe8] sm:$0xff]
  %v693 = vld [vmem:[%s9 + $0xf0] sm:$0xff]
  %v694 = vld [vmem:[%s9 + $0xf8] sm:$0xff]
  %v695 = vld [vmem:[%s9 + $0x100] sm:$0xff]
  %v696 = vld [vmem:[%s9 + $0x108] sm:$0xff]
  %v697 = vld [vmem:[%s9 + $0x110] sm:$0xff]
  %v698 = vld [vmem:[%s9 + $0x118] sm:$0xff]
  %v699 = vld [vmem:[%s9 + $0x120] sm:$0xff]
  %v700 = vld [vmem:[%s9 + $0x128] sm:$0xff]
  %v701 = vld [vmem:[%s9 + $0x130] sm:$0xff]
  %v702 = vld [vmem:[%s9 + $0x138] sm:$0xff]
  %v703 = vld [vmem:[%s9 + $0x140] sm:$0xff]
  %v704 = vld [vmem:[%s9 + $0x148] sm:$0xff]
  %v705 = vld [vmem:[%s9 + $0x150] sm:$0xff]
  %v706 = vld [vmem:[%s9 + $0x158] sm:$0xff]
  %v707 = vld [vmem:[%s9 + $0x160] sm:$0xff]
  %v708 = vld [vmem:[%s9 + $0x168] sm:$0xff]
  %v709 = vld [vmem:[%s9 + $0x170] sm:$0xff]
  %v710 = vld [vmem:[%s9 + $0x178] sm:$0xff]
  %v711 = vld [vmem:[%s9 + $0x180] sm:$0xff]
  %v712 = vld [vmem:[%s9 + $0x188] sm:$0xff]
  %v713 = vld [vmem:[%s9 + $0x190] sm:$0xff]
  %v714 = vld [vmem:[%s9 + $0x198] sm:$0xff]
  %v715 = vld [vmem:[%s9 + $0x1a0] sm:$0xff]
  %v716 = vld [vmem:[%s9 + $0x1a8] sm:$0xff]
  %v717 = vld [vmem:[%s9 + $0x1b0] sm:$0xff]
  %v718 = vld [vmem:[%s9 + $0x1b8] sm:$0xff]
  %v719 = vld [vmem:[%s9 + $0x1c0] sm:$0xff]
  %v720 = vld [vmem:[%s9 + $0x1c8] sm:$0xff]
  %v721 = vld [vmem:[%s9 + $0x1d0] sm:$0xff]
  %v722 = vld [vmem:[%s9 + $0x1d8] sm:$0xff]
  %v723 = vld [vmem:[%s9 + $0x1e0] sm:$0xff]
  %v724 = vld [vmem:[%s9 + $0x1e8] sm:$0xff]
  %v725 = vld [vmem:[%s9 + $0x1f0] sm:$0xff]
  %v726 = vld [vmem:[%s9 + $0x1f8] sm:$0xff]
  %v727 = vld [vmem:[%s9 + $0x200] sm:$0xff]
  %v728 = vld [vmem:[%s9 + $0x208] sm:$0xff]
  %v729 = vld [vmem:[%s9 + $0x210] sm:$0xff]
  %v730 = vld [vmem:[%s9 + $0x218] sm:$0xff]
  %v731 = vld [vmem:[%s9 + $0x220] sm:$0xff]
  %v732 = vld [vmem:[%s9 + $0x228] sm:$0xff]
  %v733 = vld [vmem:[%s9 + $0x230] sm:$0xff]
  %v734 = vld [vmem:[%s9 + $0x238] sm:$0xff]
  %v735 = vld [vmem:[%s9 + $0x240] sm:$0xff]
  %v736 = vld [vmem:[%s9 + $0x248] sm:$0xff]
  %v737 = vld [vmem:[%s9 + $0x250] sm:$0xff]
  %v738 = vld [vmem:[%s9 + $0x258] sm:$0xff]
  %v739 = vld [vmem:[%s9 + $0x260] sm:$0xff]
  %v740 = vld [vmem:[%s9 + $0x268] sm:$0xff]
  %v741 = vld [vmem:[%s9 + $0x270] sm:$0xff]
  %v742 = vld [vmem:[%s9 + $0x278] sm:$0xff]
  %v743 = vld [vmem:[%s9 + $0x280] sm:$0xff]
  %v744 = vld [vmem:[%s9 + $0x288] sm:$0xff]
  %v745 = vld [vmem:[%s9 + $0x290] sm:$0xff]
  %v746 = vld [vmem:[%s9 + $0x298] sm:$0xff]
  %v747 = vld [vmem:[%s9 + $0x2a0] sm:$0xff]
  %v748 = vld [vmem:[%s9 + $0x2a8] sm:$0xff]
  %v749 = vld [vmem:[%s9 + $0x2b0] sm:$0xff]
  %v750 = vld [vmem:[%s9 + $0x2b8] sm:$0xff]
  %v751 = vld [vmem:[%s9 + $0x2c0] sm:$0xff]
  %v752 = vld [vmem:[%s9 + $0x2c8] sm:$0xff]
  %v753 = vld [vmem:[%s9 + $0x2d0] sm:$0xff]
  %v754 = vld [vmem:[%s9 + $0x2d8] sm:$0xff]
  %v755 = vld [vmem:[%s9 + $0x2e0] sm:$0xff]
  %v756 = vld [vmem:[%s9 + $0x2e8] sm:$0xff]
  %v757 = vld [vmem:[%s9 + $0x2f0] sm:$0xff]
  %v758 = vld [vmem:[%s9 + $0x2f8] sm:$0xff]
  %v759 = vld [vmem:[%s9 + $0x300] sm:$0xff]
  %v760 = vld [vmem:[%s9 + $0x308] sm:$0xff]
  %v761 = vld [vmem:[%s9 + $0x310] sm:$0xff]
  %v762 = vld [vmem:[%s9 + $0x318] sm:$0xff]
  %v763 = vld [vmem:[%s9 + $0x320] sm:$0xff]
  %v764 = vld [vmem:[%s9 + $0x328] sm:$0xff]
  %v765 = vld [vmem:[%s9 + $0x330] sm:$0xff]
  %v766 = vld [vmem:[%s9 + $0x338] sm:$0xff]
  %v767 = vld [vmem:[%s9 + $0x340] sm:$0xff]
  %v768 = vld [vmem:[%s9 + $0x348] sm:$0xff]
  %v769 = vld [vmem:[%s9 + $0x350] sm:$0xff]
  %v770 = vld [vmem:[%s9 + $0x358] sm:$0xff]
  %v771 = vld [vmem:[%s9 + $0x360] sm:$0xff]
  %v772 = vld [vmem:[%s9 + $0x368] sm:$0xff]
  %v773 = vld [vmem:[%s9 + $0x370] sm:$0xff]
  %v774 = vld [vmem:[%s9 + $0x378] sm:$0xff]
  %v775 = vld [vmem:[%s10] sm:$0x7f]
  %v777 = vlaneseq
  %v778 = vshrl.u32 %v777, 7
  %v779 = vsub.s32 0, %v778
  %v780 = vrot.slane %v775, %v779
  %v781 = vlaneseq
  %v782 = vshrl.u32 %v781, 7
  %v783 = vsub.s32 1, %v782
  %v784 = vrot.slane %v775, %v783
  %v785 = vlaneseq
  %v786 = vshrl.u32 %v785, 7
  %v787 = vsub.s32 2, %v786
  %v788 = vrot.slane %v775, %v787
  %v789 = vlaneseq
  %v790 = vshrl.u32 %v789, 7
  %v791 = vsub.s32 3, %v790
  %v792 = vrot.slane %v775, %v791
  %v793 = vlaneseq
  %v794 = vshrl.u32 %v793, 7
  %v795 = vsub.s32 4, %v794
  %v796 = vrot.slane %v775, %v795
  %v797 = vlaneseq
  %v798 = vshrl.u32 %v797, 7
  %v799 = vsub.s32 5, %v798
  %v800 = vrot.slane %v775, %v799
  %v801 = vlaneseq
  %v802 = vshrl.u32 %v801, 7
  %v803 = vsub.s32 6, %v802
  %v804 = vrot.slane %v775, %v803
  %812 = vmatprep.subr.mxu0 %v664
  %813 = vmatpush1.msra.mxu0 %v663
  %814 = vmatprep.subr.mxu0 %v671
  %815 = vmatpush1.msra.mxu0 %v670
  %816 = vmatprep.subr.mxu0 %v678
  %817 = vmatpush1.msra.mxu0 %v677
  %818 = vmatprep.subr.mxu0 %v685
  %819 = vmatpush1.msra.mxu0 %v684
  %820 = vmatprep.subr.mxu0 %v692
  %821 = vmatpush1.msra.mxu0 %v691
  %822 = vmatprep.subr.mxu0 %v699
  %823 = vmatpush1.msra.mxu0 %v698
  %824 = vmatprep.subr.mxu0 %v706
  %825 = vmatpush1.msra.mxu0 %v705
  %826 = vmatprep.subr.mxu0 %v713
  %827 = vmatpush1.msra.mxu0 %v712
  %828 = vmatprep.subr.mxu0 %v720
  %829 = vmatpush1.msra.mxu0 %v719
  %830 = vmatprep.subr.mxu0 %v727
  %831 = vmatpush1.msra.mxu0 %v726
  %832 = vmatprep.subr.mxu0 %v734
  %833 = vmatpush1.msra.mxu0 %v733
  %834 = vmatprep.subr.mxu0 %v741
  %835 = vmatpush1.msra.mxu0 %v740
  %836 = vmatprep.subr.mxu0 %v748
  %837 = vmatpush1.msra.mxu0 %v747
  %838 = vmatprep.subr.mxu0 %v755
  %839 = vmatpush1.msra.mxu0 %v754
  %840 = vmatprep.subr.mxu0 %v762
  %841 = vmatpush1.msra.mxu0 %v761
  %842 = vmatprep.subr.mxu0 %v769
  %843 = vmatpush1.msra.mxu0 %v768
  %844 = vmatprep.subr.mxu0 0.0
  %845 = vmatpush1.msra.mxu0 0.0
  %846 = vmatprep.subr.mxu0 0.0
  %847 = vmatpush1.msra.mxu0 0.0
  %848 = vmatprep.subr.mxu0 0.0
  %849 = vmatpush1.msra.mxu0 0.0
  %850 = vmatprep.subr.mxu0 0.0
  %851 = vmatpush1.msra.mxu0 0.0
  %852 = vmatprep.subr.mxu0 0.0
  %853 = vmatpush1.msra.mxu0 0.0
  %854 = vmatprep.subr.mxu0 0.0
  %855 = vmatpush1.msra.mxu0 0.0
  %856 = vmatprep.subr.mxu0 0.0
  %857 = vmatpush1.msra.mxu0 0.0
  %858 = vmatprep.subr.mxu0 0.0
  %859 = vmatpush1.msra.mxu0 0.0
  %860 = vmatprep.subr.mxu0 0.0
  %861 = vmatpush1.msra.mxu0 0.0
  %862 = vmatprep.subr.mxu0 0.0
  %863 = vmatpush1.msra.mxu0 0.0
  %864 = vmatprep.subr.mxu0 0.0
  %865 = vmatpush1.msra.mxu0 0.0
  %866 = vmatprep.subr.mxu0 0.0
  %867 = vmatpush1.msra.mxu0 0.0
  %868 = vmatprep.subr.mxu0 0.0
  %869 = vmatpush1.msra.mxu0 0.0
  %870 = vmatprep.subr.mxu0 0.0
  %871 = vmatpush1.msra.mxu0 0.0
  %872 = vmatprep.subr.mxu0 0.0
  %873 = vmatpush1.msra.mxu0 0.0
  %874 = vmatprep.subr.mxu0 0.0
  %875 = vmatpush1.msra.mxu0 0.0
  %876 = vmatprep.mubr.f32.mxu0 0.0
  %877 = vmatmul.mubr.f32.gmra.mrb[0].mxu0 %v662
  %v878 = vpop.f32.mrb[0].mxu0
  %v879 = vadd.f32 %v780, %v878
  %v880 = vpop.f32.mrb[0].mxu0
  %v881 = vadd.f32 %v784, %v880
  %882 = vdwg.mxu0
  %883 = vmatprep.subr.mxu0 %v666
  %884 = vmatpush1.msra.mxu0 %v665
  %885 = vmatprep.subr.mxu0 %v673
  %886 = vmatpush1.msra.mxu0 %v672
  %887 = vmatprep.subr.mxu0 %v680
  %888 = vmatpush1.msra.mxu0 %v679
  %889 = vmatprep.subr.mxu0 %v687
  %890 = vmatpush1.msra.mxu0 %v686
  %891 = vmatprep.subr.mxu0 %v694
  %892 = vmatpush1.msra.mxu0 %v693
  %893 = vmatprep.subr.mxu0 %v701
  %894 = vmatpush1.msra.mxu0 %v700
  %895 = vmatprep.subr.mxu0 %v708
  %896 = vmatpush1.msra.mxu0 %v707
  %897 = vmatprep.subr.mxu0 %v715
  %898 = vmatpush1.msra.mxu0 %v714
  %899 = vmatprep.subr.mxu0 %v722
  %900 = vmatpush1.msra.mxu0 %v721
  %901 = vmatprep.subr.mxu0 %v729
  %902 = vmatpush1.msra.mxu0 %v728
  %903 = vmatprep.subr.mxu0 %v736
  %904 = vmatpush1.msra.mxu0 %v735
  %905 = vmatprep.subr.mxu0 %v743
  %906 = vmatpush1.msra.mxu0 %v742
  %907 = vmatprep.subr.mxu0 %v750
  %908 = vmatpush1.msra.mxu0 %v749
  %909 = vmatprep.subr.mxu0 %v757
  %910 = vmatpush1.msra.mxu0 %v756
  %911 = vmatprep.subr.mxu0 %v764
  %912 = vmatpush1.msra.mxu0 %v763
  %913 = vmatprep.subr.mxu0 %v771
  %914 = vmatpush1.msra.mxu0 %v770
  %915 = vmatprep.subr.mxu0 0.0
  %916 = vmatpush1.msra.mxu0 0.0
  %917 = vmatprep.subr.mxu0 0.0
  %918 = vmatpush1.msra.mxu0 0.0
  %919 = vmatprep.subr.mxu0 0.0
  %920 = vmatpush1.msra.mxu0 0.0
  %921 = vmatprep.subr.mxu0 0.0
  %922 = vmatpush1.msra.mxu0 0.0
  %923 = vmatprep.subr.mxu0 0.0
  %924 = vmatpush1.msra.mxu0 0.0
  %925 = vmatprep.subr.mxu0 0.0
  %926 = vmatpush1.msra.mxu0 0.0
  %927 = vmatprep.subr.mxu0 0.0
  %928 = vmatpush1.msra.mxu0 0.0
  %929 = vmatprep.subr.mxu0 0.0
  %930 = vmatpush1.msra.mxu0 0.0
  %931 = vmatprep.subr.mxu0 0.0
  %932 = vmatpush1.msra.mxu0 0.0
  %933 = vmatprep.subr.mxu0 0.0
  %934 = vmatpush1.msra.mxu0 0.0
  %935 = vmatprep.subr.mxu0 0.0
  %936 = vmatpush1.msra.mxu0 0.0
  %937 = vmatprep.subr.mxu0 0.0
  %938 = vmatpush1.msra.mxu0 0.0
  %939 = vmatprep.subr.mxu0 0.0
  %940 = vmatpush1.msra.mxu0 0.0
  %941 = vmatprep.subr.mxu0 0.0
  %942 = vmatpush1.msra.mxu0 0.0
  %943 = vmatprep.subr.mxu0 0.0
  %944 = vmatpush1.msra.mxu0 0.0
  %945 = vmatprep.subr.mxu0 0.0
  %946 = vmatpush1.msra.mxu0 0.0
  %947 = vmatprep.mubr.f32.mxu0 0.0
  %948 = vmatmul.mubr.f32.gmra.mrb[0].mxu0 %v662
  %v949 = vpop.f32.mrb[0].mxu0
  %v950 = vadd.f32 %v788, %v949
  %v951 = vpop.f32.mrb[0].mxu0
  %v952 = vadd.f32 %v792, %v951
  %953 = vdwg.mxu0
  %954 = vmatprep.subr.mxu0 %v668
  %955 = vmatpush1.msra.mxu0 %v667
  %956 = vmatprep.subr.mxu0 %v675
  %957 = vmatpush1.msra.mxu0 %v674
  %958 = vmatprep.subr.mxu0 %v682
  %959 = vmatpush1.msra.mxu0 %v681
  %960 = vmatprep.subr.mxu0 %v689
  %961 = vmatpush1.msra.mxu0 %v688
  %962 = vmatprep.subr.mxu0 %v696
  %963 = vmatpush1.msra.mxu0 %v695
  %964 = vmatprep.subr.mxu0 %v703
  %965 = vmatpush1.msra.mxu0 %v702
  %966 = vmatprep.subr.mxu0 %v710
  %967 = vmatpush1.msra.mxu0 %v709
  %968 = vmatprep.subr.mxu0 %v717
  %969 = vmatpush1.msra.mxu0 %v716
  %970 = vmatprep.subr.mxu0 %v724
  %971 = vmatpush1.msra.mxu0 %v723
  %972 = vmatprep.subr.mxu0 %v731
  %973 = vmatpush1.msra.mxu0 %v730
  %974 = vmatprep.subr.mxu0 %v738
  %975 = vmatpush1.msra.mxu0 %v737
  %976 = vmatprep.subr.mxu0 %v745
  %977 = vmatpush1.msra.mxu0 %v744
  %978 = vmatprep.subr.mxu0 %v752
  %979 = vmatpush1.msra.mxu0 %v751
  %980 = vmatprep.subr.mxu0 %v759
  %981 = vmatpush1.msra.mxu0 %v758
  %982 = vmatprep.subr.mxu0 %v766
  %983 = vmatpush1.msra.mxu0 %v765
  %984 = vmatprep.subr.mxu0 %v773
  %985 = vmatpush1.msra.mxu0 %v772
  %986 = vmatprep.subr.mxu0 0.0
  %987 = vmatpush1.msra.mxu0 0.0
  %988 = vmatprep.subr.mxu0 0.0
  %989 = vmatpush1.msra.mxu0 0.0
  %990 = vmatprep.subr.mxu0 0.0
  %991 = vmatpush1.msra.mxu0 0.0
  %992 = vmatprep.subr.mxu0 0.0
  %993 = vmatpush1.msra.mxu0 0.0
  %994 = vmatprep.subr.mxu0 0.0
  %995 = vmatpush1.msra.mxu0 0.0
  %996 = vmatprep.subr.mxu0 0.0
  %997 = vmatpush1.msra.mxu0 0.0
  %998 = vmatprep.subr.mxu0 0.0
  %999 = vmatpush1.msra.mxu0 0.0
  %1000 = vmatprep.subr.mxu0 0.0
  %1001 = vmatpush1.msra.mxu0 0.0
  %1002 = vmatprep.subr.mxu0 0.0
  %1003 = vmatpush1.msra.mxu0 0.0
  %1004 = vmatprep.subr.mxu0 0.0
  %1005 = vmatpush1.msra.mxu0 0.0
  %1006 = vmatprep.subr.mxu0 0.0
  %1007 = vmatpush1.msra.mxu0 0.0
  %1008 = vmatprep.subr.mxu0 0.0
  %1009 = vmatpush1.msra.mxu0 0.0
  %1010 = vmatprep.subr.mxu0 0.0
  %1011 = vmatpush1.msra.mxu0 0.0
  %1012 = vmatprep.subr.mxu0 0.0
  %1013 = vmatpush1.msra.mxu0 0.0
  %1014 = vmatprep.subr.mxu0 0.0
  %1015 = vmatpush1.msra.mxu0 0.0
  %1016 = vmatprep.subr.mxu0 0.0
  %1017 = vmatpush1.msra.mxu0 0.0
  %1018 = vmatprep.mubr.f32.mxu0 0.0
  %1019 = vmatmul.mubr.f32.gmra.mrb[0].mxu0 %v662
  %v1020 = vpop.f32.mrb[0].mxu0
  %v1021 = vadd.f32 %v796, %v1020
  %v1022 = vpop.f32.mrb[0].mxu0
  %v1023 = vadd.f32 %v800, %v1022
  %1024 = vdwg.mxu0
  %1025 = vmatprep.subr.mxu0 0.0
  %1026 = vmatpush1.msra.mxu0 %v669
  %1027 = vmatprep.subr.mxu0 0.0
  %1028 = vmatpush1.msra.mxu0 %v676
  %1029 = vmatprep.subr.mxu0 0.0
  %1030 = vmatpush1.msra.mxu0 %v683
  %1031 = vmatprep.subr.mxu0 0.0
  %1032 = vmatpush1.msra.mxu0 %v690
  %1033 = vmatprep.subr.mxu0 0.0
  %1034 = vmatpush1.msra.mxu0 %v697
  %1035 = vmatprep.subr.mxu0 0.0
  %1036 = vmatpush1.msra.mxu0 %v704
  %1037 = vmatprep.subr.mxu0 0.0
  %1038 = vmatpush1.msra.mxu0 %v711
  %1039 = vmatprep.subr.mxu0 0.0
  %1040 = vmatpush1.msra.mxu0 %v718
  %1041 = vmatprep.subr.mxu0 0.0
  %1042 = vmatpush1.msra.mxu0 %v725
  %1043 = vmatprep.subr.mxu0 0.0
  %1044 = vmatpush1.msra.mxu0 %v732
  %1045 = vmatprep.subr.mxu0 0.0
  %1046 = vmatpush1.msra.mxu0 %v739
  %1047 = vmatprep.subr.mxu0 0.0
  %1048 = vmatpush1.msra.mxu0 %v746
  %1049 = vmatprep.subr.mxu0 0.0
  %1050 = vmatpush1.msra.mxu0 %v753
  %1051 = vmatprep.subr.mxu0 0.0
  %1052 = vmatpush1.msra.mxu0 %v760
  %1053 = vmatprep.subr.mxu0 0.0
  %1054 = vmatpush1.msra.mxu0 %v767
  %1055 = vmatprep.subr.mxu0 0.0
  %1056 = vmatpush1.msra.mxu0 %v774
  %1057 = vmatprep.subr.mxu0 0.0
  %1058 = vmatpush1.msra.mxu0 0.0
  %1059 = vmatprep.subr.mxu0 0.0
  %1060 = vmatpush1.msra.mxu0 0.0
  %1061 = vmatprep.subr.mxu0 0.0
  %1062 = vmatpush1.msra.mxu0 0.0
  %1063 = vmatprep.subr.mxu0 0.0
  %1064 = vmatpush1.msra.mxu0 0.0
  %1065 = vmatprep.subr.mxu0 0.0
  %1066 = vmatpush1.msra.mxu0 0.0
  %1067 = vmatprep.subr.mxu0 0.0
  %1068 = vmatpush1.msra.mxu0 0.0
  %1069 = vmatprep.subr.mxu0 0.0
  %1070 = vmatpush1.msra.mxu0 0.0
  %1071 = vmatprep.subr.mxu0 0.0
  %1072 = vmatpush1.msra.mxu0 0.0
  %1073 = vmatprep.subr.mxu0 0.0
  %1074 = vmatpush1.msra.mxu0 0.0
  %1075 = vmatprep.subr.mxu0 0.0
  %1076 = vmatpush1.msra.mxu0 0.0
  %1077 = vmatprep.subr.mxu0 0.0
  %1078 = vmatpush1.msra.mxu0 0.0
  %1079 = vmatprep.subr.mxu0 0.0
  %1080 = vmatpush1.msra.mxu0 0.0
  %1081 = vmatprep.subr.mxu0 0.0
  %1082 = vmatpush1.msra.mxu0 0.0
  %1083 = vmatprep.subr.mxu0 0.0
  %1084 = vmatpush1.msra.mxu0 0.0
  %1085 = vmatprep.subr.mxu0 0.0
  %1086 = vmatpush1.msra.mxu0 0.0
  %1087 = vmatprep.subr.mxu0 0.0
  %1088 = vmatpush1.msra.mxu0 0.0
  %1089 = vmatprep.mubr.f32.mxu0 0.0
  %1090 = vmatmul.mubr.f32.gmra.mrb[0].mxu0 %v662
  %v1091 = vpop.f32.mrb[0].mxu0
  %v1092 = vadd.f32 %v804, %v1091
  %v1093 = vpop.f32.mrb[0].mxu0
  %1094 = vdwg.mxu0
  %v1095 = vmul.f32 %v879, 0.5
  %v1096 = vmul.f32 %v881, 0.5
  %v1097 = vmul.f32 %v950, 0.5
  %v1098 = vmul.f32 %v952, 0.5
  %v1099 = vmul.f32 %v1021, 0.5
  %v1100 = vmul.f32 %v1023, 0.5
  %v1101 = vmul.f32 %v1092, 0.5
  %v1102 = vtanh.pop %v1095
  %v1103 = vtanh.pop %v1096
  %v1104 = vtanh.pop %v1097
  %v1105 = vtanh.pop %v1098
  %v1106 = vtanh.pop %v1099
  %v1107 = vtanh.pop %v1100
  %v1108 = vtanh.pop %v1101
  %v1109 = vadd.f32 %v1102, 1.0
  %v1110 = vadd.f32 %v1103, 1.0
  %v1111 = vadd.f32 %v1104, 1.0
  %v1112 = vadd.f32 %v1105, 1.0
  %v1113 = vadd.f32 %v1106, 1.0
  %v1114 = vadd.f32 %v1107, 1.0
  %v1115 = vadd.f32 %v1108, 1.0
  %v1116 = vmul.f32 %v1109, 0.5
  %v1117 = vmul.f32 %v1110, 0.5
  %v1118 = vmul.f32 %v1111, 0.5
  %v1119 = vmul.f32 %v1112, 0.5
  %v1120 = vmul.f32 %v1113, 0.5
  %v1121 = vmul.f32 %v1114, 0.5
  %v1122 = vmul.f32 %v1115, 0.5
  %1123 = vst [vmem:[%s12] sm:$0xff] %v1116
  %1124 = vst [vmem:[%s12 + $0x8] sm:$0xff] %v1117
  %1125 = vst [vmem:[%s12 + $0x10] sm:$0xff] %v1118
  %1126 = vst [vmem:[%s12 + $0x18] sm:$0xff] %v1119
  %1127 = vst [vmem:[%s12 + $0x20] sm:$0xff] %v1120
  %1128 = vst [vmem:[%s12 + $0x28] sm:$0xff] %v1121
  %1129 = vst.msk [vmem:[%s12 + $0x30] sm:$0xff] %vm155, %v1122
  %1131 = vrot.lane.b32.xlu0 %v623, 2
  %v1132 = vpop.permute.xlu0 %1131
  %vm1134 = vcmask 15360
  %v1135 = vsel %vm1134, %v530, %v1132
  %vm1136 = vcmask 31744
  %1137 = vst.msk [vmem:[%s13] sm:$0xff] %vm1136, %v1135
  // Predicated region
  $region50: #{vae_forward.1} parent=0 // pred_check
    _
  $region51: #{vae_forward.1} parent=0 // pred_check_branch
    %1139 = sbr.rel (0) target = $region53
  $region52: #{vae_forward.1} parent=0 // pred_region
    _
  $region53: #{vae_forward.1} parent=0 // pred_fallthru
    _
  // Predicated region
  $region54: #{vae_forward.1} parent=0 // pred_check
    _
  $region55: #{vae_forward.1} parent=0 // pred_check_branch
    %1141 = sbr.rel (0) target = $region57
  $region56: #{vae_forward.1} parent=0 // pred_region
    _
  $region57: #{vae_forward.1} parent=0 // pred_fallthru
    _
  // Predicated region
  $region58: #{vae_forward.1} parent=0 // pred_check
    _
  $region59: #{vae_forward.1} parent=0 // pred_check_branch
    %1143 = sbr.rel (0) target = $region61
  $region60: #{vae_forward.1} parent=0 // pred_region
    _
  $region61: #{vae_forward.1} parent=0 // pred_fallthru
    _
  // Predicated region
  $region62: #{vae_forward.1} parent=0 // pred_check
    _
  $region63: #{vae_forward.1} parent=0 // pred_check_branch
    %1145 = sbr.rel (0) target = $region65
  $region64: #{vae_forward.1} parent=0 // pred_region
    _
  $region65: #{vae_forward.1} parent=0 // pred_fallthru
    _

</llo_original>
